<compile_context>
chip_gen: v7x
topology: tpu7x:2x2x1
jax: 0.10.0
libtpu: 0.0.40
codegen_flags: <defaults>
</compile_context>

<pallas_src>
import jax
import jax.numpy as jnp
from jax.experimental import pallas as pl
from jax.experimental.pallas import tpu as pltpu

_EPS = 1e-5


# ----------------------------- layout helpers -------------------------------

def _ceil_to(x, m):
    return ((x + m - 1) // m) * m


def _layout(channel_list):
    """Packed-scratch / packed-weight layout (all offsets 16-aligned)."""
    C0, C1, C2 = channel_list
    # Segment 0: input channels + one constant-1 row (folded bias) + zero pad.
    seg_pad = [_ceil_to(C0 + 1, 16)] + [_ceil_to(C1, 16)] * 3
    prefix = [0]
    for p in seg_pad:
        prefix.append(prefix[-1] + p)
    ctot_pad = prefix[-1]                       # packed activation rows
    out_ch = [C1, C1, C1, C2]                   # conv1..conv4 output channels
    row_pad = [seg_pad[1], seg_pad[2], seg_pad[3], _ceil_to(C2, 16)]
    row_off = [0]
    for p in row_pad:
        row_off.append(row_off[-1] + p)
    rows_pad = row_off[-1]                      # packed weight rows
    return dict(seg_pad=seg_pad, prefix=prefix, ctot_pad=ctot_pad,
                out_ch=out_ch, row_pad=row_pad, row_off=row_off,
                rows_pad=rows_pad, bias_col=C0)


def _vmem_limit_bytes():
    """Generation-aware scoped-VMEM limit (96 MiB on v5e/v6e, ~48 MiB on v7x)."""
    try:
        info = pltpu.get_tpu_info()
        phys = getattr(info, 'vmem_capacity_bytes', None)
        if phys:
            return int(min(96 * 1024 * 1024, phys * 3 // 4))
    except Exception:
        pass
    return 48 * 1024 * 1024


def _const_spec(a):
    return pl.BlockSpec(a.shape, lambda *idx: (0,) * a.ndim)


# ----------------------------- Pallas kernels ------------------------------

def _make_dense_body(layout):
    prefix = layout['prefix']
    row_off = layout['row_off']
    row_pad = layout['row_pad']
    out_ch = layout['out_ch']
    seg_pad0 = layout['seg_pad'][0]

    def body(x_ref, w_ref, cat_ref):
        # x_ref block: (1, seg_pad0, TL) bf16 (input + ones bias row + zero pad).
        cat_ref[0:seg_pad0, :] = x_ref[0]
        x4 = None
        for l in range(4):
            K = prefix[l + 1]                     # channels visible to layer l
            ro = row_off[l]
            rp = row_pad[l] if l < 3 else out_ch[3]
            h = jnp.dot(w_ref[ro:ro + rp, 0:K], cat_ref[0:K, :],
                        preferred_element_type=jnp.float32)
            h = jax.nn.relu(h)                    # bias folded into ones column
            if l < 3:
                # Padded rows of h are exactly zero (zero weight rows & bias),
                # so the full 16-aligned segment is written -> no scratch init.
                cat_ref[prefix[l + 1]:prefix[l + 2], :] = h.astype(cat_ref.dtype)
            else:
                x4 = h
        return x4                                 # (C2, TL) float32

    return body


def _make_plain_kernel(layout):
    body = _make_dense_body(layout)

    def kernel(x_ref, w_ref, o_ref, cat_ref):
        x4 = body(x_ref, w_ref, cat_ref)
        o_ref[0] = x4.astype(o_ref.dtype)
    return kernel


def _make_se_pass1_kernel(layout):
    body = _make_dense_body(layout)

    def kernel(x_ref, w_ref, o_ref, max_ref, cat_ref):
        x4 = body(x_ref, w_ref, cat_ref)
        o_ref[0] = x4.astype(o_ref.dtype)

        @pl.when(pl.program_id(1) == 0)
        def _():
            max_ref[...] = jnp.full_like(max_ref, -jnp.inf)

        max_ref[0] = jnp.maximum(max_ref[0], jnp.max(x4, axis=1, keepdims=True))
    return kernel


def _se_scale_kernel(max_ref, wf1_ref, bf1_ref, wf2_ref, bf2_ref, x_ref, o_ref):
    # SE gate (tiny matmuls, recomputed per tile — negligible) + scale.
    se = max_ref[0]                                            # (C2, 1) f32
    se = jax.nn.relu(
        jnp.dot(wf1_ref[...], se, preferred_element_type=jnp.float32)
        + bf1_ref[...])
    se = jax.nn.sigmoid(
        jnp.dot(wf2_ref[...], se, preferred_element_type=jnp.float32)
        + bf2_ref[...])
    o_ref[0] = (x_ref[0].astype(jnp.float32) * se).astype(o_ref.dtype)


# ------------------------------- wrapper ------------------------------------

def run_densenet1d(points, kparams, channel_list, seblock=False,
                   out_dtype=jnp.bfloat16, max_tile=8192):
    """points: [B, C0, nsample, npoint] -> [B, C2, nsample, npoint]."""
    B, C0, ns, npnt = points.shape
    _, _, C2 = channel_list
    L = ns * npnt
    layout = _layout(channel_list)
    seg_pad0 = layout['seg_pad'][0]
    ctot_pad = layout['ctot_pad']

    # ---- host-side prep: spatial tile / pad + channel pad + bias row + bf16 ----
    TL = min(max_tile, _ceil_to(L, 128))
    L_pad = _ceil_to(L, TL)
    x = points.reshape(B, C0, L)
    if L_pad != L:
        # Edge-pad: padded lanes duplicate real columns, so the SE max is exact.
        x = jnp.pad(x, ((0, 0), (0, 0), (0, L_pad - L)), mode='edge')
    ones = jnp.ones((B, 1, L_pad), points.dtype)
    zpad = jnp.zeros((B, seg_pad0 - C0 - 1, L_pad), points.dtype)
    x = jnp.concatenate([x, ones, zpad], axis=1).astype(jnp.bfloat16)

    grid = (B, L_pad // TL)
    x_spec = pl.BlockSpec((1, seg_pad0, TL), lambda b, l: (b, 0, l))
    o_spec = pl.BlockSpec((1, C2, TL), lambda b, l: (b, 0, l))
    w_all = kparams['w_all']
    scratch = [pltpu.VMEM((ctot_pad, TL), jnp.bfloat16)]
    vmem_limit = _vmem_limit_bytes()

    if not seblock:
        out = pl.pallas_call(
            _make_plain_kernel(layout),
            out_shape=jax.ShapeDtypeStruct((B, C2, L_pad), out_dtype),
            grid=grid,
            in_specs=[x_spec, _const_spec(w_all)],
            out_specs=o_spec,
            scratch_shapes=scratch,
            compiler_params=pltpu.CompilerParams(
                dimension_semantics=("parallel", "parallel"),
                vmem_limit_bytes=vmem_limit),
        )(x, w_all)
        return out[:, :, :L].reshape(B, C2, ns, npnt)

    # ---- seblock=True: two-pass, L-tiled (bounded VMEM on every generation) ----
    # Pass 1: dense stack per tile + running per-batch channel max (accumulator
    # over the "arbitrary" L axis).
    x4, chan_max = pl.pallas_call(
        _make_se_pass1_kernel(layout),
        out_shape=(jax.ShapeDtypeStruct((B, C2, L_pad), out_dtype),
                   jax.ShapeDtypeStruct((B, C2, 1), jnp.float32)),
        grid=grid,
        in_specs=[x_spec, _const_spec(w_all)],
        out_specs=[o_spec,
                   pl.BlockSpec((1, C2, 1), lambda b, l: (b, 0, 0))],
        scratch_shapes=scratch,
        compiler_params=pltpu.CompilerParams(
            dimension_semantics=("parallel", "arbitrary"),
            vmem_limit_bytes=vmem_limit),
    )(x, w_all)

    # Pass 2: SE gate + elementwise scale, L-tiled and lane-dense.
    wf1, bf1, wf2, bf2 = (kparams['wf1'], kparams['bf1'],
                          kparams['wf2'], kparams['bf2'])
    out = pl.pallas_call(
        _se_scale_kernel,
        out_shape=jax.ShapeDtypeStruct((B, C2, L_pad), out_dtype),
        grid=grid,
        in_specs=[pl.BlockSpec((1, C2, 1), lambda b, l: (b, 0, 0)),
                  _const_spec(wf1), _const_spec(bf1),
                  _const_spec(wf2), _const_spec(bf2),
                  o_spec],
        out_specs=o_spec,
        compiler_params=pltpu.CompilerParams(
            dimension_semantics=("parallel", "parallel"),
            vmem_limit_bytes=vmem_limit),
    )(chan_max, wf1, bf1, wf2, bf2, x4)

    return out[:, :, :L].reshape(B, C2, ns, npnt)


# -------------------- deterministic params + BN folding ---------------------

def init_params(key, channel_list):
    C0, C1, C2 = channel_list
    Cse = C2 // 16
    ks = iter(jax.random.split(key, 64))

    def w(shape, scale=0.1):
        return scale * jax.random.normal(next(ks), shape, jnp.float32)

    def bn(C):
        g = 1.0 + 0.1 * jax.random.normal(next(ks), (C,), jnp.float32)
        b = 0.1 * jax.random.normal(next(ks), (C,), jnp.float32)
        m = 0.1 * jax.random.normal(next(ks), (C,), jnp.float32)
        v = jax.random.uniform(next(ks), (C,), jnp.float32, 0.5, 1.5)
        return (g, b, m, v)

    return {
        'conv1': (w((C1, C0, 1)), w((C1,))),
        'conv2': (w((C1, C0 + C1, 1)), w((C1,))),
        'conv3': (w((C1, C0 + 2 * C1, 1)), w((C1,))),
        'conv4': (w((C2, C0 + 3 * C1, 1)), w((C2,))),
        'bn1': bn(C1), 'bn2': bn(C1), 'bn3': bn(C1), 'bn4': bn(C2),
        'fc1': (w((Cse, C2)), w((Cse,))),
        'fc2': (w((C2, Cse)), w((C2,))),
        'bnfc1': bn(Cse), 'bnfc2': bn(C2),
    }


def fold_params(raw, channel_list):
    """Fold BN (inference) + bias into one packed bf16 weight array (+ SE fc)."""
    C0, C1, C2 = channel_list
    layout = _layout(channel_list)
    prefix, row_off, out_ch = layout['prefix'], layout['row_off'], layout['out_ch']
    rows_pad, ctot_pad = layout['rows_pad'], layout['ctot_pad']
    bias_col = layout['bias_col']
    seg_sizes = [C0, C1, C1, C1]

    W_all = jnp.zeros((rows_pad, ctot_pad), jnp.float32)
    layers = [('conv1', 'bn1'), ('conv2', 'bn2'), ('conv3', 'bn3'), ('conv4', 'bn4')]
    for l, (cname, bname) in enumerate(layers):
        (w, b), (g, beta, m, v) = raw[cname], raw[bname]
        s = g / jnp.sqrt(v + _EPS)
        wf = w[:, :, 0] * s[:, None]                      # (C_out, C_in)
        bf = s * b + (beta - s * m)                       # (C_out,)
        ro, co = row_off[l], out_ch[l]
        cin = 0
        for si in range(l + 1):                           # layer l sees x0..xl
            cs = seg_sizes[si]
            W_all = W_all.at[ro:ro + co,
                             prefix[si]:prefix[si] + cs].set(wf[:, cin:cin + cs])
            cin += cs
        W_all = W_all.at[ro:ro + co, bias_col].set(bf)    # bias -> ones column

    kp = {'w_all': W_all.astype(jnp.bfloat16)}

    def fold_fc(wb, bnp):
        (w, b), (g, beta, m, v) = wb, bnp
        s = g / jnp.sqrt(v + _EPS)
        return w * s[:, None], (s * b + (beta - s * m)).reshape(-1, 1)

    kp['wf1'], kp['bf1'] = fold_fc(raw['fc1'], raw['bnfc1'])   # (Cse,C2),(Cse,1)
    kp['wf2'], kp['bf2'] = fold_fc(raw['fc2'], raw['bnfc2'])   # (C2,Cse),(C2,1)
    return kp


# --------------------------- pure-JAX reference ------------------------------

def reference_forward(points, raw, seblock):
    B, C0, ns, npnt = points.shape
    x0 = points.reshape(B, C0, ns * npnt)

    def conv(x, p):
        w, b = p
        return jnp.einsum('oc,bcl->bol', w[:, :, 0], x) + b[None, :, None]

    def bn3(x, p):
        g, b, m, v = p
        return (g[None, :, None] * (x - m[None, :, None])
                / jnp.sqrt(v[None, :, None] + _EPS) + b[None, :, None])

    def bn2(x, p):
        g, b, m, v = p
        return g[None, :] * (x - m[None, :]) / jnp.sqrt(v[None, :] + _EPS) + b[None, :]

    x1 = jax.nn.relu(bn3(conv(x0, raw['conv1']), raw['bn1']))
    y1 = jnp.concatenate([x0, x1], axis=1)
    x2 = jax.nn.relu(bn3(conv(y1, raw['conv2']), raw['bn2']))
    y2 = jnp.concatenate([y1, x2], axis=1)
    x3 = jax.nn.relu(bn3(conv(y2, raw['conv3']), raw['bn3']))
    y3 = jnp.concatenate([y2, x3], axis=1)
    x4 = jax.nn.relu(bn3(conv(y3, raw['conv4']), raw['bn4']))

    if seblock:
        se = jnp.max(x4, axis=-1)                         # [B, C2]
        wf1, bf1 = raw['fc1']
        wf2, bf2 = raw['fc2']
        se = jax.nn.relu(bn2(se @ wf1.T + bf1[None, :], raw['bnfc1']))
        se = jax.nn.sigmoid(bn2(se @ wf2.T + bf2[None, :], raw['bnfc2']))
        x4 = x4 * se[:, :, None]

    C2 = x4.shape[1]
    return x4.reshape(B, C2, ns, npnt)


# ---------------------------------- main -------------------------------------

if __name__ == "__main__":
    channel_list = [4, 16, 32]      # [C_in, C_mid, C_out]; C_out // 16 == 2
    B, ns, npnt = 2, 8, 16          # points: [B, D, nsample, npoint]

    key = jax.random.PRNGKey(0)
    pkey, xkey = jax.random.split(key)
    raw = init_params(pkey, channel_list)
    kparams = fold_params(raw, channel_list)
    points = jax.random.normal(xkey, (B, channel_list[0], ns, npnt), jnp.float32)

    for seblock in (False, True):
        out = jax.block_until_ready(
            run_densenet1d(points, kparams, channel_list, seblock=seblock))
        ref = reference_forward(points, raw, seblock)
        assert out.shape == (B, channel_list[2], ns, npnt), out.shape
        err = float(jnp.max(jnp.abs(out.astype(jnp.float32) - ref)))
        scale = float(jnp.max(jnp.abs(ref)))
        # bf16 matmul operands + bf16 output (f32 accumulation) -> relaxed tol.
        tol = 3e-2 + 3e-2 * scale
        if err > tol:
            raise AssertionError(
                f"mismatch (seblock={seblock}): max err {err} (tol {tol})")

    print("KERNEL_OK")
</pallas_src>

<mosaic_0001>
module attributes {stable_mosaic.version = 11 : i64} {
  func.func @kernel(%arg0: i32, %arg1: i32, %arg2: memref<1x16x128xbf16, #tpu.memory_space<vmem>>, %arg3: memref<80x64xbf16, #tpu.memory_space<vmem>>, %arg4: memref<1x32x128xbf16, #tpu.memory_space<vmem>>, %arg5: memref<64x128xbf16, #tpu.memory_space<vmem>>) attributes {dimension_semantics = [#tpu.dimension_semantics<parallel>, #tpu.dimension_semantics<parallel>], iteration_bounds = array<i64: 2, 1>, scalar_prefetch = 0 : i64, scratch_operands = 1 : i64, tpu.core_type = #tpu.core_type<tc>, window_params = [{transform_indices = @transform_0, window_bounds = array<i64: 1, 16, 128>}, {pipeline_mode = #tpu.pipeline_mode<synchronous>, transform_indices = @transform_1, window_bounds = array<i64: 80, 64>}, {transform_indices = @transform_2, window_bounds = array<i64: 1, 32, 128>}]} {
    %c0 = arith.constant 0 : index
    %c0_0 = arith.constant 0 : index
    %c0_1 = arith.constant 0 : index
    %0 = vector.load %arg2[%c0, %c0_0, %c0_1] : memref<1x16x128xbf16, #tpu.memory_space<vmem>>, vector<1x16x128xbf16>
    %1 = vector.shape_cast %0 : vector<1x16x128xbf16> to vector<16x128xbf16>
    %c0_2 = arith.constant 0 : index
    %c0_3 = arith.constant 0 : index
    %2 = vector.load %arg5[%c0_2, %c0_3] : memref<64x128xbf16, #tpu.memory_space<vmem>>, vector<16x128xbf16>
    tpu.vector_store %arg5[%c0_2, %c0_3], %1 {strides = array<i32>} : memref<64x128xbf16, #tpu.memory_space<vmem>>, vector<16x128xbf16>,
    %c0_4 = arith.constant 0 : index
    %c0_5 = arith.constant 0 : index
    %3 = vector.load %arg3[%c0_4, %c0_5] : memref<80x64xbf16, #tpu.memory_space<vmem>>, vector<16x16xbf16>
    %c0_6 = arith.constant 0 : index
    %c0_7 = arith.constant 0 : index
    %4 = vector.load %arg5[%c0_6, %c0_7] : memref<64x128xbf16, #tpu.memory_space<vmem>>, vector<16x128xbf16>
    %cst = arith.constant dense<0.000000e+00> : vector<16x128xf32>
    %5 = tpu.matmul %3, %4, %cst {dimension_numbers = #tpu.dot_dimension_numbers<[1], [0], [0], [1], [0, 0, 1, 1], [], []>} : vector<16x16xbf16>, vector<16x128xbf16>, vector<16x128xf32> -> vector<16x128xf32>
    %cst_8 = arith.constant 0.000000e+00 : f32
    %6 = vector.broadcast %cst_8 : f32 to vector<16x128xf32>
    %7 = arith.maximumf %5, %6 : vector<16x128xf32>
    %8 = arith.truncf %7 : vector<16x128xf32> to vector<16x128xbf16>
    %c16 = arith.constant 16 : index
    %c0_9 = arith.constant 0 : index
    %9 = vector.load %arg5[%c16, %c0_9] : memref<64x128xbf16, #tpu.memory_space<vmem>>, vector<16x128xbf16>
    tpu.vector_store %arg5[%c16, %c0_9], %8 {strides = array<i32>} : memref<64x128xbf16, #tpu.memory_space<vmem>>, vector<16x128xbf16>,
    %c16_10 = arith.constant 16 : index
    %c0_11 = arith.constant 0 : index
    %10 = vector.load %arg3[%c16_10, %c0_11] : memref<80x64xbf16, #tpu.memory_space<vmem>>, vector<16x32xbf16>
    %c0_12 = arith.constant 0 : index
    %c0_13 = arith.constant 0 : index
    %11 = vector.load %arg5[%c0_12, %c0_13] : memref<64x128xbf16, #tpu.memory_space<vmem>>, vector<32x128xbf16>
    %cst_14 = arith.constant dense<0.000000e+00> : vector<16x128xf32>
    %12 = tpu.matmul %10, %11, %cst_14 {dimension_numbers = #tpu.dot_dimension_numbers<[1], [0], [0], [1], [0, 0, 1, 1], [], []>} : vector<16x32xbf16>, vector<32x128xbf16>, vector<16x128xf32> -> vector<16x128xf32>
    %cst_15 = arith.constant 0.000000e+00 : f32
    %13 = vector.broadcast %cst_15 : f32 to vector<16x128xf32>
    %14 = arith.maximumf %12, %13 : vector<16x128xf32>
    %15 = arith.truncf %14 : vector<16x128xf32> to vector<16x128xbf16>
    %c32 = arith.constant 32 : index
    %c0_16 = arith.constant 0 : index
    %16 = vector.load %arg5[%c32, %c0_16] : memref<64x128xbf16, #tpu.memory_space<vmem>>, vector<16x128xbf16>
    tpu.vector_store %arg5[%c32, %c0_16], %15 {strides = array<i32>} : memref<64x128xbf16, #tpu.memory_space<vmem>>, vector<16x128xbf16>,
    %c32_17 = arith.constant 32 : index
    %c0_18 = arith.constant 0 : index
    %17 = vector.load %arg3[%c32_17, %c0_18] : memref<80x64xbf16, #tpu.memory_space<vmem>>, vector<16x48xbf16>
    %c0_19 = arith.constant 0 : index
    %c0_20 = arith.constant 0 : index
    %18 = vector.load %arg5[%c0_19, %c0_20] : memref<64x128xbf16, #tpu.memory_space<vmem>>, vector<48x128xbf16>
    %cst_21 = arith.constant dense<0.000000e+00> : vector<16x128xf32>
    %19 = tpu.matmul %17, %18, %cst_21 {dimension_numbers = #tpu.dot_dimension_numbers<[1], [0], [0], [1], [0, 0, 1, 1], [], []>} : vector<16x48xbf16>, vector<48x128xbf16>, vector<16x128xf32> -> vector<16x128xf32>
    %cst_22 = arith.constant 0.000000e+00 : f32
    %20 = vector.broadcast %cst_22 : f32 to vector<16x128xf32>
    %21 = arith.maximumf %19, %20 : vector<16x128xf32>
    %22 = arith.truncf %21 : vector<16x128xf32> to vector<16x128xbf16>
    %c48 = arith.constant 48 : index
    %c0_23 = arith.constant 0 : index
    %23 = vector.load %arg5[%c48, %c0_23] : memref<64x128xbf16, #tpu.memory_space<vmem>>, vector<16x128xbf16>
    tpu.vector_store %arg5[%c48, %c0_23], %22 {strides = array<i32>} : memref<64x128xbf16, #tpu.memory_space<vmem>>, vector<16x128xbf16>,
    %c48_24 = arith.constant 48 : index
    %c0_25 = arith.constant 0 : index
    %24 = vector.load %arg3[%c48_24, %c0_25] : memref<80x64xbf16, #tpu.memory_space<vmem>>, vector<32x64xbf16>
    %c0_26 = arith.constant 0 : index
    %c0_27 = arith.constant 0 : index
    %25 = vector.load %arg5[%c0_26, %c0_27] : memref<64x128xbf16, #tpu.memory_space<vmem>>, vector<64x128xbf16>
    %cst_28 = arith.constant dense<0.000000e+00> : vector<32x128xf32>
    %26 = tpu.matmul %24, %25, %cst_28 {dimension_numbers = #tpu.dot_dimension_numbers<[1], [0], [0], [1], [0, 0, 1, 1], [], []>} : vector<32x64xbf16>, vector<64x128xbf16>, vector<32x128xf32> -> vector<32x128xf32>
    %cst_29 = arith.constant 0.000000e+00 : f32
    %27 = vector.broadcast %cst_29 : f32 to vector<32x128xf32>
    %28 = arith.maximumf %26, %27 : vector<32x128xf32>
    %29 = arith.truncf %28 : vector<32x128xf32> to vector<32x128xbf16>
    %c0_30 = arith.constant 0 : index
    %c0_31 = arith.constant 0 : index
    %c0_32 = arith.constant 0 : index
    %30 = vector.load %arg4[%c0_30, %c0_31, %c0_32] : memref<1x32x128xbf16, #tpu.memory_space<vmem>>, vector<1x32x128xbf16>
    %31 = vector.shape_cast %30 : vector<1x32x128xbf16> to vector<32x128xbf16>
    %32 = vector.shape_cast %29 : vector<32x128xbf16> to vector<1x32x128xbf16>
    tpu.vector_store %arg4[%c0_30, %c0_31, %c0_32], %32 {strides = array<i32>} : memref<1x32x128xbf16, #tpu.memory_space<vmem>>, vector<1x32x128xbf16>,
    return
  }
  func.func @transform_0(%arg0: i32, %arg1: i32) -> (i32, i32, i32) {
    %c0_i32 = arith.constant 0 : i32
    %c0_i32_0 = arith.constant 0 : i32
    return %arg0, %c0_i32, %arg1 : i32, i32, i32
  }
  func.func @transform_1(%arg0: i32, %arg1: i32) -> (i32, i32) {
    %c0_i32 = arith.constant 0 : i32
    %c0_i32_0 = arith.constant 0 : i32
    %c0_i32_1 = arith.constant 0 : i32
    return %c0_i32, %c0_i32_0 : i32, i32
  }
  func.func @transform_2(%arg0: i32, %arg1: i32) -> (i32, i32, i32) {
    %c0_i32 = arith.constant 0 : i32
    %c0_i32_0 = arith.constant 0 : i32
    return %arg0, %c0_i32, %arg1 : i32, i32, i32
  }
}

</mosaic_0001>

<llo_original>
// kernel: tpu_custom_call.1
$region0: #{tpu_custom_call.1}
  #allocation0 [shape = 'u32[]', space=smem, size = 0x4, offset = 0x4, fixed_abs, tag = 'smem constant byte address 0x4 - core index']
  #allocation1 [shape = 'u32[144,128]{1,0:T(1,128)}', space=vmem, size = 0x12000, scoped, tag = 'internal scratch']
  #allocation2 [shape = 'bf16[64,128]{1,0:T(16,128)(2,1)}', space=vmem, size = 0x4000, scoped, tag = 'scratch operand']
  %s0 = inlined_call_operand.vmem [shape: bf16[2,16,128], index: 0, kind: input, shape index: {}]
  %s1 = inlined_call_operand.vmem [shape: bf16[80,64], index: 1, kind: input, shape index: {}]
  %s2 = inlined_call_operand.hbm [shape: bf16[2,32,128], index: 2, kind: output, shape index: {}]
  %s3 = sld [smem:[#allocation0]]
  $region41: #{tpu_custom_call.1} parent=0
    _
  %s5 = ssub.s32 1, %s3
  %s6 = scalar_select 0, %s5, %s3
  $region1: #{tpu_custom_call.1} parent=0
    #allocation3 [shape = 'u8[16384]{0}', space=vmem, size = 0x4000, scoped, tag = 'output window, operand 0']
    #allocation4 [shape = 's32[2]{0}', space=sflag, size = 0x8, scoped, tag = 'scoped memory for tpu_custom_call.1']
    %7 = vsyncpa [#allocation4], 0
    %s8 = scalar_lea.sflag [#allocation4], 1
    %9 = vsyncpa %s8, 0
    loop: start=0, step=1, limit=4
    $region2: #{tpu_custom_call.1} parent=1 // loop_pre_header
      _
    $region3: #{tpu_custom_call.1} parent=1 // loop_header
      %s11 = sphi 0, %s15
      %p12 = scmp.ge.s32.totalorder %s11, 4
      %s18 = sphi 0, %s30
      %s19 = sphi 0, %s26
      %s20 = sphi 0, %s18
      %s21 = sphi 0, %s19
      %s22 = sphi 0, %s20
      %s23 = sphi 0, %s21
      %s35 = sphi 0, %s37
      %s38 = sphi 0, %s35
      %s39 = sphi 0, %s38
      %s55 = sphi 0, %s39
      %s59 = sphi 0, %s59
      %s61 = sphi 0, %s59
      %s62 = sphi 0, %s61
      %s76 = sphi 0, %s62
      %s84 = sphi 0, %s86
      %s87 = sphi 0, %s84
      %s88 = sphi 0, %s87
      %s104 = sphi 0, %s88
    $region4: #{tpu_custom_call.1} parent=1 // loop_header_branch
      %14 = sbr.rel (%p12) target = $region8
    $region5: #{tpu_custom_call.1} parent=1 // loop_body
      %s16 = ssub.s32 %s11, 1
      %s17 = ssub.s32 %s11, 2
      %s24 = sadd.s32 1, %s19
      %p25 = scmp.ge.s32.totalorder %s24, 1
      %s26 = scalar_select %p25, 0, %s24
      %s27 = sadd.s32 1, %s18
      %s28 = scalar_select %p25, %s27, %s18
      %p29 = scmp.ge.s32.totalorder %s28, 2
      %s30 = scalar_select %p29, 0, %s28
      %s31 = ssub.s32 %s18, %s30
      %s32 = ssub.s32 %s19, %s26
      %s33 = sor.u32 %s31, %s32
      %p34 = scmp.eq.s32.totalorder %s33, 0
      %s36 = sadd.s32 %s35, 1
      %s37 = scalar_select %p34, %s35, %s36
      %p40 = pneg %p34
      %p41 = scmp.eq.s32.totalorder %s11, 1
      %p42 = por %p40, %p41
      %p43 = scmp.ne.s32.totalorder %s35, %s38
      %p44 = scmp.eq.s32.totalorder %s11, 0
      %p45 = por %p43, %p44
      %p46 = scmp.ne.s32.totalorder %s35, %s38
      %p47 = scmp.eq.s32.totalorder %s16, 1
      %p48 = por %p46, %p47
      %p49 = scmp.ne.s32.totalorder %s38, %s39
      %p50 = scmp.eq.s32.totalorder %s16, 0
      %p51 = por %p49, %p50
      %p52 = scmp.ne.s32.totalorder %s38, %s39
      %p53 = scmp.eq.s32.totalorder %s17, 1
      %p54 = por %p52, %p53
      %p56 = scmp.ne.s32.totalorder %s39, %s55
      %p57 = scmp.eq.s32.totalorder %s17, 0
      %p58 = por %p56, %p57
      %s60 = sadd.s32 %s59, 1
      %p63 = scmp.eq.s32.totalorder %s11, 1
      %p64 = scmp.ne.s32.totalorder %s59, %s61
      %p65 = scmp.eq.s32.totalorder %s11, 0
      %p66 = por %p64, %p65
      %p67 = scmp.ne.s32.totalorder %s59, %s61
      %p68 = scmp.eq.s32.totalorder %s16, 1
      %p69 = por %p67, %p68
      %p70 = scmp.ne.s32.totalorder %s61, %s62
      %p71 = scmp.eq.s32.totalorder %s16, 0
      %p72 = por %p70, %p71
      %p73 = scmp.ne.s32.totalorder %s61, %s62
      %p74 = scmp.eq.s32.totalorder %s17, 1
      %p75 = por %p73, %p74
      %p77 = scmp.ne.s32.totalorder %s62, %s76
      %p78 = scmp.eq.s32.totalorder %s17, 0
      %p79 = por %p77, %p78
      %s80 = ssub.s32 %s18, %s30
      %s81 = ssub.s32 %s19, %s26
      %s82 = sor.u32 %s80, %s81
      %p83 = scmp.eq.s32.totalorder %s82, 0
      %s85 = sadd.s32 %s84, 1
      %s86 = scalar_select %p83, %s84, %s85
      %p89 = pneg %p83
      %p90 = scmp.eq.s32.totalorder %s11, 1
      %p91 = por %p89, %p90
      %p92 = scmp.ne.s32.totalorder %s84, %s87
      %p93 = scmp.eq.s32.totalorder %s11, 0
      %p94 = por %p92, %p93
      %p95 = scmp.ne.s32.totalorder %s84, %s87
      %p96 = scmp.eq.s32.totalorder %s16, 1
      %p97 = por %p95, %p96
      %p98 = scmp.ne.s32.totalorder %s87, %s88
      %p99 = scmp.eq.s32.totalorder %s16, 0
      %p100 = por %p98, %p99
      %p101 = scmp.ne.s32.totalorder %s87, %s88
      %p102 = scmp.eq.s32.totalorder %s17, 1
      %p103 = por %p101, %p102
      %p105 = scmp.ne.s32.totalorder %s88, %s104
      %p106 = scmp.eq.s32.totalorder %s17, 0
      %p107 = por %p105, %p106
      %p108 = scmp.le.s32.totalorder 1, %s11
      %p109 = scmp.lt.s32.totalorder %s11, 3
      %p110 = pnand %p108, %p109
      %p111 = pneg %p110
      // Predicated region
      $region9: #{tpu_custom_call.1} parent=5 // pred_check
        _
      $region10: #{tpu_custom_call.1} parent=5 // pred_check_branch
        %113 = sbr.rel (%p110) target = $region12
      $region11: #{tpu_custom_call.1} parent=5 // pred_region
        %s114 = ssub.s32 %s11, 1
        // Predicated region
        $region13: #{tpu_custom_call.1} parent=11 // pred_check
          %p115 = pneg %p72
        $region14: #{tpu_custom_call.1} parent=11 // pred_check_branch
          %117 = sbr.rel (%p115) target = $region16
        $region15: #{tpu_custom_call.1} parent=11 // pred_region
          _
        $region16: #{tpu_custom_call.1} parent=11 // pred_fallthru
          _
      $region12: #{tpu_custom_call.1} parent=5 // pred_fallthru
        _
      %p118 = scmp.lt.s32.totalorder %s11, 2
      // Predicated region
      $region17: #{tpu_custom_call.1} parent=5 // pred_check
        %p119 = pneg %p118
      $region18: #{tpu_custom_call.1} parent=5 // pred_check_branch
        %121 = sbr.rel (%p119) target = $region20
      $region19: #{tpu_custom_call.1} parent=5 // pred_region
        // Predicated region
        $region21: #{tpu_custom_call.1} parent=19 // pred_check
          %p122 = pneg %p45
        $region22: #{tpu_custom_call.1} parent=19 // pred_check_branch
          %124 = sbr.rel (%p122) target = $region24
        $region23: #{tpu_custom_call.1} parent=19 // pred_region
          %p125 = scmp.lt.s32.totalorder %s18, 1
          %s126 = scalar_select %p125, %s18, 1
          %p127 = scmp.lt.s32.totalorder %s19, 0
          %s128 = scalar_select %p127, %s19, 0
          %s129 = smul.addr %s126, 2
          %s130 = sadd.s32 %s128, %s129
          %s131 = smul.addr %s130, 4
          %s132 = scalar_lea.vmem %s0, %s131
        $region24: #{tpu_custom_call.1} parent=19 // pred_fallthru
          _
      $region20: #{tpu_custom_call.1} parent=5 // pred_fallthru
        _
      %p133 = scmp.le.s32.totalorder 1, %s11
      %p134 = scmp.lt.s32.totalorder %s11, 3
      %p135 = pnand %p133, %p134
      %p136 = pneg %p135
      // Predicated region
      $region25: #{tpu_custom_call.1} parent=5 // pred_check
        _
      $region26: #{tpu_custom_call.1} parent=5 // pred_check_branch
        %138 = sbr.rel (%p135) target = $region28
      $region27: #{tpu_custom_call.1} parent=5 // pred_region
        %s139 = ssub.s32 %s11, 1
        %p140 = scmp.lt.s32.totalorder %s20, 1
        %s141 = scalar_select %p140, %s20, 1
        %p142 = scmp.lt.s32.totalorder %s21, 0
        %s143 = scalar_select %p142, %s21, 0
        %s144 = smul.addr %s141, 2
        %s145 = sadd.s32 %s143, %s144
        %s146 = smul.addr %s145, 4
        %s147 = scalar_lea.vmem %s0, %s146
        %p148 = pneg %p51
        %p149 = pneg %p48
        %p150 = pneg %p72
        %p151 = pneg %p69
        %p152 = pneg %p100
        %p153 = pneg %p97
        %s154 = sand.u32 %s87, 1
        %s155 = scalar_lea.sflag [#allocation4], %s154
        %s156 = sand.u32 %s87, 1
        %s157 = smul.addr %s156, 16
        %s158 = scalar_lea.vmem [#allocation3], %s157
        %p159 = scmp.lt.s32.totalorder %s20, 1
        %s160 = scalar_select %p159, %s20, 1
        %p161 = scmp.lt.s32.totalorder %s21, 0
        %s162 = scalar_select %p161, %s21, 0
        %s163 = smul.addr %s160, 2
        %s164 = sadd.s32 %s162, %s163
        %s165 = smul.addr %s164, 4
        %s166 = scalar_lea.vmem %s0, %s165
        %v168 = vld [vmem:[%s166] sm:$0xf]
        %v169 = vld [vmem:[%s166 + $0x4] sm:$0xf]
        %v172 = vunpack.c.l.b16 %v168
        %v173 = vunpack.c.l.b16 %v169
        %v174 = vpack.c.b16 %v173, %v172
        %176 = vst [vmem:[#allocation2] sm:$0xff] %v174
        %v177 = vld [vmem:[%s1] sm:$0xf]
        %v178 = vld [vmem:[%s1 + $0x4] sm:$0xf]
        %v179 = vld [vmem:[#allocation2] sm:$0xff]
        %v182 = vunpack.c.l.b16 %v177
        %v183 = vunpack.c.l.b16 %v178
        %v184 = vpack.c.b16 %v183, %v182
        %vm185 = vcmask 130048
        %v187 = vsel %vm185, %v184, 0
        %189 = vmatprep.subr.bf16.mxu0 0
        %190 = vmatpush1.bf16.msra.mxu0 %v179
        %191 = vmatprep.subr.bf16.mxu0 0
        %192 = vmatpush1.bf16.msra.mxu0 0
        %193 = vmatprep.subr.bf16.mxu0 0
        %194 = vmatpush1.bf16.msra.mxu0 0
        %195 = vmatprep.subr.bf16.mxu0 0
        %196 = vmatpush1.bf16.msra.mxu0 0
        %197 = vmatprep.subr.bf16.mxu0 0
        %198 = vmatpush1.bf16.msra.mxu0 0
        %199 = vmatprep.subr.bf16.mxu0 0
        %200 = vmatpush1.bf16.msra.mxu0 0
        %201 = vmatprep.subr.bf16.mxu0 0
        %202 = vmatpush1.bf16.msra.mxu0 0
        %203 = vmatprep.subr.bf16.mxu0 0
        %204 = vmatpush1.bf16.msra.mxu0 0
        %205 = vmatprep.subr.bf16.mxu0 0
        %206 = vmatpush1.bf16.msra.mxu0 0
        %207 = vmatprep.subr.bf16.mxu0 0
        %208 = vmatpush1.bf16.msra.mxu0 0
        %209 = vmatprep.subr.bf16.mxu0 0
        %210 = vmatpush1.bf16.msra.mxu0 0
        %211 = vmatprep.subr.bf16.mxu0 0
        %212 = vmatpush1.bf16.msra.mxu0 0
        %213 = vmatprep.subr.bf16.mxu0 0
        %214 = vmatpush1.bf16.msra.mxu0 0
        %215 = vmatprep.subr.bf16.mxu0 0
        %216 = vmatpush1.bf16.msra.mxu0 0
        %217 = vmatprep.subr.bf16.mxu0 0
        %218 = vmatpush1.bf16.msra.mxu0 0
        %219 = vmatprep.subr.bf16.mxu0 0
        %220 = vmatpush1.bf16.msra.mxu0 0
        %221 = vmatprep.mubr.bf16.mxu0 0
        %222 = vmatmul.mubr.bf16.gmra.mrb[0].mxu0 %v187
        %v223 = vpop.f32.mrb[0].mxu0
        %v224 = vadd.f32 0.0, %v223
        %v225 = vpop.f32.mrb[0].mxu0
        %v226 = vpop.f32.mrb[0].mxu0
        %v227 = vadd.f32 0.0, %v226
        %v228 = vpop.f32.mrb[0].mxu0
        %229 = vdwg.mxu0
        %v230 = vmax.f32 %v224, 0.0
        %v231 = vmax.f32 %v227, 0.0
        %v232 = vpack.c.bf16 %v231, %v230
        %233 = vst [vmem:[#allocation2 + $0x8] sm:$0xff] %v232
        %v234 = vld [vmem:[%s1 + $0x8] sm:$0xf]
        %v235 = vld [vmem:[%s1 + $0xc] sm:$0xf]
        %v236 = vld [vmem:[#allocation2] sm:$0xff]
        %v237 = vld [vmem:[#allocation2 + $0x8] sm:$0xff]
        %v240 = vunpack.c.l.b16 %v234
        %v241 = vunpack.c.l.b16 %v235
        %v242 = vpack.c.b16 %v241, %v240
        %vm243 = vcmask 261120
        %v245 = vsel %vm243, %v242, 0
        %247 = vmatprep.subr.bf16.mxu0 0
        %248 = vmatpush1.bf16.msra.mxu0 %v236
        %249 = vmatprep.subr.bf16.mxu0 0
        %250 = vmatpush1.bf16.msra.mxu0 %v237
        %251 = vmatprep.subr.bf16.mxu0 0
        %252 = vmatpush1.bf16.msra.mxu0 0
        %253 = vmatprep.subr.bf16.mxu0 0
        %254 = vmatpush1.bf16.msra.mxu0 0
        %255 = vmatprep.subr.bf16.mxu0 0
        %256 = vmatpush1.bf16.msra.mxu0 0
        %257 = vmatprep.subr.bf16.mxu0 0
        %258 = vmatpush1.bf16.msra.mxu0 0
        %259 = vmatprep.subr.bf16.mxu0 0
        %260 = vmatpush1.bf16.msra.mxu0 0
        %261 = vmatprep.subr.bf16.mxu0 0
        %262 = vmatpush1.bf16.msra.mxu0 0
        %263 = vmatprep.subr.bf16.mxu0 0
        %264 = vmatpush1.bf16.msra.mxu0 0
        %265 = vmatprep.subr.bf16.mxu0 0
        %266 = vmatpush1.bf16.msra.mxu0 0
        %267 = vmatprep.subr.bf16.mxu0 0
        %268 = vmatpush1.bf16.msra.mxu0 0
        %269 = vmatprep.subr.bf16.mxu0 0
        %270 = vmatpush1.bf16.msra.mxu0 0
        %271 = vmatprep.subr.bf16.mxu0 0
        %272 = vmatpush1.bf16.msra.mxu0 0
        %273 = vmatprep.subr.bf16.mxu0 0
        %274 = vmatpush1.bf16.msra.mxu0 0
        %275 = vmatprep.subr.bf16.mxu0 0
        %276 = vmatpush1.bf16.msra.mxu0 0
        %277 = vmatprep.subr.bf16.mxu0 0
        %278 = vmatpush1.bf16.msra.mxu0 0
        %279 = vmatprep.mubr.bf16.mxu0 0
        %280 = vmatmul.mubr.bf16.gmra.mrb[0].mxu0 %v245
        %v281 = vpop.f32.mrb[0].mxu0
        %v282 = vadd.f32 0.0, %v281
        %v283 = vpop.f32.mrb[0].mxu0
        %v284 = vpop.f32.mrb[0].mxu0
        %v285 = vadd.f32 0.0, %v284
        %v286 = vpop.f32.mrb[0].mxu0
        %287 = vdwg.mxu0
        %v288 = vmax.f32 %v282, 0.0
        %v289 = vmax.f32 %v285, 0.0
        %v290 = vpack.c.bf16 %v289, %v288
        %291 = vst [vmem:[#allocation2 + $0x10] sm:$0xff] %v290
        %v292 = vld [vmem:[%s1 + $0x10] sm:$0xf]
        %v293 = vld [vmem:[%s1 + $0x14] sm:$0xf]
        %v294 = vld [vmem:[#allocation2] sm:$0xff]
        %v295 = vld [vmem:[#allocation2 + $0x8] sm:$0xff]
        %v296 = vld [vmem:[#allocation2 + $0x10] sm:$0xff]
        %v299 = vunpack.c.l.b16 %v292
        %v300 = vunpack.c.l.b16 %v293
        %v301 = vpack.c.b16 %v300, %v299
        %vm302 = vcmask 392192
        %v304 = vsel %vm302, %v301, 0
        %306 = vmatprep.subr.bf16.mxu0 0
        %307 = vmatpush1.bf16.msra.mxu0 %v294
        %308 = vmatprep.subr.bf16.mxu0 0
        %309 = vmatpush1.bf16.msra.mxu0 %v295
        %310 = vmatprep.subr.bf16.mxu0 0
        %311 = vmatpush1.bf16.msra.mxu0 %v296
        %312 = vmatprep.subr.bf16.mxu0 0
        %313 = vmatpush1.bf16.msra.mxu0 0
        %314 = vmatprep.subr.bf16.mxu0 0
        %315 = vmatpush1.bf16.msra.mxu0 0
        %316 = vmatprep.subr.bf16.mxu0 0
        %317 = vmatpush1.bf16.msra.mxu0 0
        %318 = vmatprep.subr.bf16.mxu0 0
        %319 = vmatpush1.bf16.msra.mxu0 0
        %320 = vmatprep.subr.bf16.mxu0 0
        %321 = vmatpush1.bf16.msra.mxu0 0
        %322 = vmatprep.subr.bf16.mxu0 0
        %323 = vmatpush1.bf16.msra.mxu0 0
        %324 = vmatprep.subr.bf16.mxu0 0
        %325 = vmatpush1.bf16.msra.mxu0 0
        %326 = vmatprep.subr.bf16.mxu0 0
        %327 = vmatpush1.bf16.msra.mxu0 0
        %328 = vmatprep.subr.bf16.mxu0 0
        %329 = vmatpush1.bf16.msra.mxu0 0
        %330 = vmatprep.subr.bf16.mxu0 0
        %331 = vmatpush1.bf16.msra.mxu0 0
        %332 = vmatprep.subr.bf16.mxu0 0
        %333 = vmatpush1.bf16.msra.mxu0 0
        %334 = vmatprep.subr.bf16.mxu0 0
        %335 = vmatpush1.bf16.msra.mxu0 0
        %336 = vmatprep.subr.bf16.mxu0 0
        %337 = vmatpush1.bf16.msra.mxu0 0
        %338 = vmatprep.mubr.bf16.mxu0 0
        %339 = vmatmul.mubr.bf16.gmra.mrb[0].mxu0 %v304
        %v340 = vpop.f32.mrb[0].mxu0
        %v341 = vadd.f32 0.0, %v340
        %v342 = vpop.f32.mrb[0].mxu0
        %v343 = vpop.f32.mrb[0].mxu0
        %v344 = vadd.f32 0.0, %v343
        %v345 = vpop.f32.mrb[0].mxu0
        %346 = vdwg.mxu0
        %v347 = vmax.f32 %v341, 0.0
        %v348 = vmax.f32 %v344, 0.0
        %v349 = vpack.c.bf16 %v348, %v347
        %350 = vst [vmem:[#allocation2 + $0x18] sm:$0xff] %v349
        %v351 = vld [vmem:[%s1 + $0x18] sm:$0xf]
        %v352 = vld [vmem:[%s1 + $0x1c] sm:$0xf]
        %v353 = vld [vmem:[%s1 + $0x20] sm:$0xf]
        %v354 = vld [vmem:[%s1 + $0x24] sm:$0xf]
        %v355 = vld [vmem:[#allocation2] sm:$0xff]
        %v356 = vld [vmem:[#allocation2 + $0x8] sm:$0xff]
        %v357 = vld [vmem:[#allocation2 + $0x10] sm:$0xff]
        %v358 = vld [vmem:[#allocation2 + $0x18] sm:$0xff]
        %v363 = vunpack.c.l.b16 %v351
        %v364 = vunpack.c.l.b16 %v352
        %v365 = vunpack.c.l.b16 %v353
        %v366 = vunpack.c.l.b16 %v354
        %v367 = vpack.c.b16 %v364, %v363
        %v368 = vpack.c.b16 %v366, %v365
        %vm369 = vcmask 523264
        %v371 = vsel %vm369, %v367, 0
        %v374 = vsel %vm369, %v368, 0
        %376 = vmatprep.subr.bf16.mxu0 0
        %377 = vmatpush1.bf16.msra.mxu0 %v355
        %378 = vmatprep.subr.bf16.mxu0 0
        %379 = vmatpush1.bf16.msra.mxu0 %v356
        %380 = vmatprep.subr.bf16.mxu0 0
        %381 = vmatpush1.bf16.msra.mxu0 %v357
        %382 = vmatprep.subr.bf16.mxu0 0
        %383 = vmatpush1.bf16.msra.mxu0 %v358
        %384 = vmatprep.subr.bf16.mxu0 0
        %385 = vmatpush1.bf16.msra.mxu0 0
        %386 = vmatprep.subr.bf16.mxu0 0
        %387 = vmatpush1.bf16.msra.mxu0 0
        %388 = vmatprep.subr.bf16.mxu0 0
        %389 = vmatpush1.bf16.msra.mxu0 0
        %390 = vmatprep.subr.bf16.mxu0 0
        %391 = vmatpush1.bf16.msra.mxu0 0
        %392 = vmatprep.subr.bf16.mxu0 0
        %393 = vmatpush1.bf16.msra.mxu0 0
        %394 = vmatprep.subr.bf16.mxu0 0
        %395 = vmatpush1.bf16.msra.mxu0 0
        %396 = vmatprep.subr.bf16.mxu0 0
        %397 = vmatpush1.bf16.msra.mxu0 0
        %398 = vmatprep.subr.bf16.mxu0 0
        %399 = vmatpush1.bf16.msra.mxu0 0
        %400 = vmatprep.subr.bf16.mxu0 0
        %401 = vmatpush1.bf16.msra.mxu0 0
        %402 = vmatprep.subr.bf16.mxu0 0
        %403 = vmatpush1.bf16.msra.mxu0 0
        %404 = vmatprep.subr.bf16.mxu0 0
        %405 = vmatpush1.bf16.msra.mxu0 0
        %406 = vmatprep.subr.bf16.mxu0 0
        %407 = vmatpush1.bf16.msra.mxu0 0
        %408 = vmatprep.mubr.bf16.mxu0 0
        %409 = vmatmul.mubr.bf16.gmra.mrb[0].mxu0 %v371
        %v410 = vpop.f32.mrb[0].mxu0
        %v411 = vadd.f32 0.0, %v410
        %v412 = vpop.f32.mrb[0].mxu0
        %v413 = vpop.f32.mrb[0].mxu0
        %v414 = vadd.f32 0.0, %v413
        %v415 = vpop.f32.mrb[0].mxu0
        %416 = vmatprep.mubr.bf16.mxu0 0
        %417 = vmatmul.mubr.bf16.gmra.mrb[0].mxu0 %v374
        %v418 = vpop.f32.mrb[0].mxu0
        %v419 = vadd.f32 0.0, %v418
        %v420 = vpop.f32.mrb[0].mxu0
        %v421 = vpop.f32.mrb[0].mxu0
        %v422 = vadd.f32 0.0, %v421
        %v423 = vpop.f32.mrb[0].mxu0
        %424 = vdwg.mxu0
        %v425 = vmax.f32 %v411, 0.0
        %v426 = vmax.f32 %v414, 0.0
        %v427 = vmax.f32 %v419, 0.0
        %v428 = vmax.f32 %v422, 0.0
        %v429 = vpack.c.bf16 %v426, %v425
        %v430 = vpack.c.bf16 %v428, %v427
        %v433 = vunpack.c.l.b16 %v429
        %v434 = vunpack.c.h.b16 %v429
        %v435 = vunpack.c.l.b16 %v430
        %v436 = vunpack.c.h.b16 %v430
        %v437 = vpack.c.b16 %v433, %v433
        %v438 = vpack.c.b16 %v434, %v434
        %v439 = vpack.c.b16 %v435, %v435
        %v440 = vpack.c.b16 %v436, %v436
        %445 = vst [vmem:[%s158] sm:$0xf] %v437
        %446 = vst [vmem:[%s158 + $0x4] sm:$0xf] %v438
        %447 = vst [vmem:[%s158 + $0x8] sm:$0xf] %v439
        %448 = vst [vmem:[%s158 + $0xc] sm:$0xf] %v440
        %s449 = sand.u32 %s87, 1
        %s450 = scalar_lea.sflag [#allocation4], %s449
        %s451 = sand.u32 %s87, 1
        %s452 = smul.addr %s451, 16
        %s453 = scalar_lea.vmem [#allocation3], %s452
        // Predicated region
        $region29: #{tpu_custom_call.1} parent=27 // pred_check
          %p454 = pneg %p97
        $region30: #{tpu_custom_call.1} parent=27 // pred_check_branch
          %456 = sbr.rel (%p454) target = $region32
        $region31: #{tpu_custom_call.1} parent=27 // pred_region
          %s458 = ssub.s32 256, 256
          %459 = vsyncadd %s450, %s458
          %s460 = smul.addr %s20, 4
          %s461 = sadd.s32 %s21, %s460
          %s462 = smul.addr %s461, 64
          %s463 = scalar_lea.hbm %s2, %s462
          %s464 = sshll.u32 %s453, 4
          %s465 = int_to_ptr.vmem [resolvable:$true] %s464
          %470 = dma.vmem_to_hbm [thread:$0]  %s465, 256, %s463, %s450, 64, 64, 4
        $region32: #{tpu_custom_call.1} parent=27 // pred_fallthru
          _
      $region28: #{tpu_custom_call.1} parent=5 // pred_fallthru
        _
      %p471 = scmp.le.s32.totalorder 2, %s11
      // Predicated region
      $region33: #{tpu_custom_call.1} parent=5 // pred_check
        %p472 = pneg %p471
      $region34: #{tpu_custom_call.1} parent=5 // pred_check_branch
        %474 = sbr.rel (%p472) target = $region36
      $region35: #{tpu_custom_call.1} parent=5 // pred_region
        %s475 = ssub.s32 %s11, 2
        // Predicated region
        $region37: #{tpu_custom_call.1} parent=35 // pred_check
          %p476 = pneg %p103
        $region38: #{tpu_custom_call.1} parent=35 // pred_check_branch
          %478 = sbr.rel (%p476) target = $region40
        $region39: #{tpu_custom_call.1} parent=35 // pred_region
          %s479 = sand.u32 %s88, 1
          %s480 = scalar_lea.sflag [#allocation4], %s479
          %s481 = sand.u32 %s88, 1
          %s482 = smul.addr %s481, 16
          %s483 = scalar_lea.vmem [#allocation3], %s482
          %484 = dma.done %s480, 256
        $region40: #{tpu_custom_call.1} parent=35 // pred_fallthru
          _
      $region36: #{tpu_custom_call.1} parent=5 // pred_fallthru
        _
    $region6: #{tpu_custom_call.1} parent=1 // loop_footer
      %s15 = sadd.s32 1, %s11
    $region7: #{tpu_custom_call.1} parent=1 // loop_footer_branch
      %10 = sbr.rel target = $region3
    $region8: #{tpu_custom_call.1} parent=1 // loop_exit
      _
    %485 = vsyncpa [#allocation4], 1
    %s486 = scalar_lea.sflag [#allocation4], 1
    %487 = vsyncpa %s486, 1

</llo_original>
